<compile_context>
chip_gen: v7x
topology: tpu7x:2x2x1
jax: 0.10.0
libtpu: 0.0.40
codegen_flags: <defaults>
</compile_context>

<pallas_src>
import functools

import jax
import jax.numpy as jnp
from jax.experimental import pallas as pl
from jax.experimental.pallas import tpu as pltpu


_NEG_INF = -1e30


def _round_up(x, m):
    return (x + m - 1) // m * m


def _vmem_limit_bytes():
    """Generation-dependent scoped-VMEM limit (~3/4 of physical, capped at 100 MiB)."""
    cap = 64 * 1024 * 1024            # conservative default = v7x physical VMEM
    try:
        cap = int(pltpu.get_tpu_info().vmem_capacity_bytes)
    except Exception:                 # info query is best-effort
        pass
    return min((cap * 3) // 4, 100 * 1024 * 1024)


def _pick_row_tile(n):
    """Query-row tile: multiple of 8, <=128; >64 is rounded to 128 so the
    (smaller, power-of-two) key tiles always divide it."""
    t = min(128, _round_up(n, 8))
    return 128 if t > 64 else t


def _pick_divisor_tile(total, cap):
    """Largest tile <= cap (multiple of 8) that divides `total` (a multiple of 8)."""
    t = min(cap, total)
    while total % t:
        t //= 2
    return max(t, 8)


def _leaky_relu(x, alpha):
    return jnp.where(x > 0, x, alpha * x)


def _elu(x):
    # F.elu(alpha=1); clamp before exp so large positives never produce inf.
    return jnp.where(x > 0, x, jnp.exp(jnp.minimum(x, 0.0)) - 1.0)


# --------------------------- projection kernels ----------------------------- #

def _proj_v1_kernel(h_ref, wt_ref, wh_ref):
    wh = jnp.dot(h_ref[...], wt_ref[...], preferred_element_type=jnp.float32)
    wh_ref[...] = wh.astype(wh_ref.dtype)


def _proj_v2_kernel(h_ref, wv2t_ref, w12t_ref, uv_ref):
    hv = jnp.dot(h_ref[...], wv2t_ref[...], preferred_element_type=jnp.float32)
    uv = jnp.dot(hv, w12t_ref[...], preferred_element_type=jnp.float32)
    uv_ref[...] = uv.astype(uv_ref.dtype)


def _project(kernel, inputs, rows, out_cols, tile_r, vmem_limit):
    """Row-tiled projection over all (batch * padded-node) rows at once.
    `inputs` = (activations (rows, K), *full weights).  The output is stored in
    bfloat16 to halve the HBM round trip into the attention kernels."""
    act, *weights = inputs
    k = act.shape[1]
    in_specs = [pl.BlockSpec((tile_r, k), lambda r: (r, 0))]
    in_specs += [pl.BlockSpec(w.shape, lambda r: (0, 0)) for w in weights]
    return pl.pallas_call(
        kernel,
        out_shape=jax.ShapeDtypeStruct((rows, out_cols), jnp.bfloat16),
        grid=(rows // tile_r,),
        in_specs=in_specs,
        out_specs=pl.BlockSpec((tile_r, out_cols), lambda r: (r, 0)),
        compiler_params=pltpu.CompilerParams(
            dimension_semantics=("parallel",),
            vmem_limit_bytes=vmem_limit),
    )(act, *weights)


# ---------------------------- attention kernels ------------------------------ #

def _gat_v1_attn_kernel(e1_ref, e2_ref, whk_ref, out_ref, m_sc, l_sc, acc_sc,
                        *, alpha, n_valid, tile_j):
    j = pl.program_id(2)

    @pl.when(j == 0)
    def _():
        m_sc[...] = jnp.full_like(m_sc, _NEG_INF)
        l_sc[...] = jnp.zeros_like(l_sc)
        acc_sc[...] = jnp.zeros_like(acc_sc)

    # Logits e[i, j] = leakyrelu(Wh[i].a_i + Wh[j].a_j); both halves were folded
    # into spare projection columns, so this is a pure VPU broadcast-add.
    e1 = e1_ref[0]                                   # (TILE_I, 1)  f32
    e2 = e2_ref[0]                                   # (1, TILE_J)  f32
    e = _leaky_relu(e1 + e2, alpha)                  # (TILE_I, TILE_J)
    col = j * tile_j + jax.lax.broadcasted_iota(jnp.int32, e.shape, 1)
    e = jnp.where(col < n_valid, e, _NEG_INF)

    # Online softmax.  The first j-tile always contains column 0 < n_valid, so
    # the running max is finite before any fully-padded tail tile is reached
    # (masked tiles then contribute exp(-1e30 - m) == 0).
    m_prev = m_sc[...]
    m_new = jnp.maximum(m_prev, jnp.max(e, axis=-1, keepdims=True))
    corr = jnp.exp(m_prev - m_new)
    p = jnp.exp(e - m_new)
    l_sc[...] = corr * l_sc[...] + jnp.sum(p, axis=-1, keepdims=True)
    # att @ Wh on the MXU: bf16 operands, f32 accumulation.
    acc_sc[...] = corr * acc_sc[...] + jnp.dot(
        p.astype(jnp.bfloat16), whk_ref[0], preferred_element_type=jnp.float32)
    m_sc[...] = m_new

    @pl.when(j == pl.num_programs(2) - 1)
    def _():
        inv = pl.reciprocal(l_sc[...], approx=True)
        out_ref[0] = _elu(acc_sc[...] * inv).astype(out_ref.dtype)


def _gat_v2_attn_kernel(u_ref, v_ref, a_ref, out_ref, m_sc, l_sc, acc_sc,
                        *, alpha, n_valid, tile_j, mxu_contract):
    j = pl.program_id(2)

    @pl.when(j == 0)
    def _():
        m_sc[...] = jnp.full_like(m_sc, _NEG_INF)
        l_sc[...] = jnp.zeros_like(l_sc)
        acc_sc[...] = jnp.zeros_like(acc_sc)

    u = u_ref[0].astype(jnp.float32)                 # (TILE_I, O)
    v = v_ref[0].astype(jnp.float32)                 # (TILE_J, O)
    a = a_ref[...]                                   # (1, O) f32

    # Per-tile slab Wh[i, j, :] = leakyrelu(U[i] + V[j]); (N, N, O) never exists.
    slab = _leaky_relu(u[:, None, :] + v[None, :, :], alpha)     # (TI, TJ, O)
    e = jnp.sum(slab * a[None, :, :], axis=-1)                   # (TI, TJ) lane reduce
    col = j * tile_j + jax.lax.broadcasted_iota(jnp.int32, e.shape, 1)
    e = jnp.where(col < n_valid, e, _NEG_INF)

    # Online softmax (same first-tile-has-a-valid-column invariant as v1).
    m_prev = m_sc[...]
    m_new = jnp.maximum(m_prev, jnp.max(e, axis=-1, keepdims=True))
    corr = jnp.exp(m_prev - m_new)
    p = jnp.exp(e - m_new)
    l_sc[...] = corr * l_sc[...] + jnp.sum(p, axis=-1, keepdims=True)
    if mxu_contract:
        # Batched (over i) TJ-contraction on the otherwise idle MXU.
        pv = jnp.einsum('ij,ijo->io', p.astype(jnp.bfloat16),
                        slab.astype(jnp.bfloat16),
                        preferred_element_type=jnp.float32)
    else:
        # VPU multiply + sublane reduce (previously validated fallback path).
        pv = jnp.sum(p[:, :, None] * slab, axis=1)
    acc_sc[...] = corr * acc_sc[...] + pv
    m_sc[...] = m_new

    @pl.when(j == pl.num_programs(2) - 1)
    def _():
        inv = pl.reciprocal(l_sc[...], approx=True)
        out_ref[0] = _elu(acc_sc[...] * inv).astype(out_ref.dtype)


# ------------------------------- wrappers ------------------------------------ #

def graph_attention_v1(h, W, A_i, A_j, *, alpha=0.1):
    """GAT v1 forward. h: (B, N, inp); W: (outp, inp); A_i, A_j: (1, outp)."""
    B, N, inp = h.shape
    outp = W.shape[0]
    out_dtype = h.dtype
    f32 = jnp.float32
    vmem_limit = _vmem_limit_bytes()

    # +2 spare columns carry the folded Wh.a_i / Wh.a_j logit halves.
    outp_p = _round_up(outp + 2, 128)
    tile_i = _pick_row_tile(N)
    n_p = _round_up(N, tile_i)
    tile_j = _pick_divisor_tile(n_p, 512)

    # Single host-side pad (node dim only; feature dim stays unpadded).
    h_pad = jnp.pad(h.astype(f32), ((0, 0), (0, n_p - N), (0, 0)))
    hf = h_pad.reshape(B * n_p, inp)                           # free reshape

    wt_core = W.T.astype(f32)                                  # (inp, outp)
    wt = (jnp.zeros((inp, outp_p), f32)
          .at[:, :outp].set(wt_core)
          .at[:, outp].set(wt_core @ A_i[0].astype(f32))        # -> Wh . a_i
          .at[:, outp + 1].set(wt_core @ A_j[0].astype(f32)))   # -> Wh . a_j

    # One flattened projection matmul over all B * n_p rows; bf16 output.
    rows = B * n_p
    tile_r = _pick_divisor_tile(rows, 512)
    wh_flat = _project(_proj_v1_kernel, (hf, wt), rows, outp_p, tile_r, vmem_limit)

    wh = wh_flat.reshape(B, n_p, outp_p)                        # (B, n_p, O_p) bf16
    e1 = wh_flat[:, outp].astype(f32).reshape(B, n_p, 1)        # query-side logit half
    e2 = wh_flat[:, outp + 1].astype(f32).reshape(B, 1, n_p)    # key-side, lane-dense

    kernel = functools.partial(_gat_v1_attn_kernel, alpha=alpha, n_valid=N,
                               tile_j=tile_j)
    out = pl.pallas_call(
        kernel,
        out_shape=jax.ShapeDtypeStruct((B, n_p, outp_p), out_dtype),
        grid=(B, n_p // tile_i, n_p // tile_j),
        in_specs=[
            pl.BlockSpec((1, tile_i, 1), lambda b, i, j: (b, i, 0)),        # e1 column
            pl.BlockSpec((1, 1, tile_j), lambda b, i, j: (b, 0, j)),        # e2 row
            pl.BlockSpec((1, tile_j, outp_p), lambda b, i, j: (b, j, 0)),   # Wh key tile
        ],
        out_specs=pl.BlockSpec((1, tile_i, outp_p), lambda b, i, j: (b, i, 0)),
        scratch_shapes=[
            pltpu.VMEM((tile_i, 1), f32),        # running max
            pltpu.VMEM((tile_i, 1), f32),        # running denom
            pltpu.VMEM((tile_i, outp_p), f32),   # running accumulator
        ],
        compiler_params=pltpu.CompilerParams(
            dimension_semantics=("parallel", "parallel", "arbitrary"),
            vmem_limit_bytes=vmem_limit),
    )(e1, e2, wh)
    return out[:, :N, :outp]


def graph_attention_v2(h, W_v2, W, A_i, *, alpha=0.1):
    """GAT v2 forward. h: (B, N, inp); W_v2: (outp, inp); W: (outp, 2*outp); A_i: (1, outp)."""
    B, N, inp = h.shape
    outp = W_v2.shape[0]
    out_dtype = h.dtype
    f32 = jnp.float32
    vmem_limit = _vmem_limit_bytes()

    outp_p = _round_up(outp, 128)
    tile_i = _pick_row_tile(N)
    n_p = _round_up(N, tile_i)
    # Key tile: <= 64, shrunk further under a ~6x-live-slab budget (the kernel
    # keeps ~5-6 (TI, TJ, O) temporaries alive at once).
    tile_j = _pick_divisor_tile(n_p, 64)
    slab_budget = (vmem_limit * 3) // 5
    while (tile_j > 8 and tile_j % 16 == 0
           and 6 * tile_i * tile_j * outp_p * 4 > slab_budget):
        tile_j //= 2

    h_pad = jnp.pad(h.astype(f32), ((0, 0), (0, n_p - N), (0, 0)))
    hf = h_pad.reshape(B * n_p, inp)

    wv2t = jnp.zeros((inp, outp_p), f32).at[:, :outp].set(W_v2.T.astype(f32))
    # Fused [W1^T | W2^T]: U and V come out of one lane-dense (.., 2*outp_p) matmul.
    w12t = (jnp.zeros((outp_p, 2 * outp_p), f32)
            .at[:outp, :outp].set(W[:, :outp].T.astype(f32))
            .at[:outp, outp_p:outp_p + outp].set(W[:, outp:].T.astype(f32)))
    a_vec = jnp.zeros((1, outp_p), f32).at[0, :outp].set(A_i[0].astype(f32))

    rows = B * n_p
    tile_r = _pick_divisor_tile(rows, 512)
    uv = _project(_proj_v2_kernel, (hf, wv2t, w12t), rows, 2 * outp_p, tile_r,
                  vmem_limit).reshape(B, n_p, 2 * outp_p)       # bf16, U | V fused

    def attn_call(mxu_contract):
        kernel = functools.partial(_gat_v2_attn_kernel, alpha=alpha, n_valid=N,
                                   tile_j=tile_j, mxu_contract=mxu_contract)
        return pl.pallas_call(
            kernel,
            out_shape=jax.ShapeDtypeStruct((B, n_p, outp_p), out_dtype),
            grid=(B, n_p // tile_i, n_p // tile_j),
            in_specs=[
                pl.BlockSpec((1, tile_i, outp_p), lambda b, i, j: (b, i, 0)),  # U tile
                pl.BlockSpec((1, tile_j, outp_p), lambda b, i, j: (b, j, 1)),  # V tile
                pl.BlockSpec((1, outp_p), lambda b, i, j: (0, 0)),             # a vector
            ],
            out_specs=pl.BlockSpec((1, tile_i, outp_p), lambda b, i, j: (b, i, 0)),
            scratch_shapes=[
                pltpu.VMEM((tile_i, 1), f32),        # running max
                pltpu.VMEM((tile_i, 1), f32),        # running denom
                pltpu.VMEM((tile_i, outp_p), f32),   # running accumulator
            ],
            compiler_params=pltpu.CompilerParams(
                dimension_semantics=("parallel", "parallel", "arbitrary"),
                vmem_limit_bytes=vmem_limit),
        )(uv, uv, a_vec)

    try:
        out = jax.block_until_ready(attn_call(mxu_contract=True))
    except Exception:
        # The installed Pallas lowering rejected the batched dot_general; fall
        # back to the previously validated VPU contraction.
        out = attn_call(mxu_contract=False)
    return out[:, :N, :outp]


# ------------------------------- references ---------------------------------- #

_HI = jax.lax.Precision.HIGHEST


def ref_gat_v1(h, W, A_i, A_j, alpha):
    Wh = jnp.einsum('bni,oi->bno', h, W, precision=_HI)
    e1 = jnp.einsum('bno,ko->bnk', Wh, A_i, precision=_HI)
    e2 = jnp.einsum('bno,ko->bnk', Wh, A_j, precision=_HI)
    e = jax.nn.leaky_relu(e1 + jnp.swapaxes(e2, -1, -2), alpha)
    att = jax.nn.softmax(e, axis=-1)
    hp = jnp.einsum('bnm,bmo->bno', att, Wh, precision=_HI)
    return jax.nn.elu(hp)


def ref_gat_v2(h, W_v2, W, A_i, alpha):
    hv = jnp.einsum('bni,oi->bno', h, W_v2, precision=_HI)
    B, N, outp = hv.shape
    hi = jnp.broadcast_to(hv[:, :, None, :], (B, N, N, outp))
    hj = jnp.broadcast_to(hv[:, None, :, :], (B, N, N, outp))
    hij = jnp.concatenate([hi, hj], axis=-1)
    Wh = jax.nn.leaky_relu(jnp.einsum('bnmc,oc->bnmo', hij, W, precision=_HI), alpha)
    e = jnp.einsum('bnmo,ko->bnmk', Wh, A_i, precision=_HI)[..., 0]
    att = jax.nn.softmax(e, axis=-1)
    hp = jnp.einsum('bnm,bnmo->bno', att, Wh, precision=_HI)
    return jax.nn.elu(hp)


# --------------------------------- main --------------------------------------- #

if __name__ == "__main__":
    B, N, INP, OUTP = 2, 10, 16, 32      # N=10 exercises the node-pad/mask path
    ALPHA = 0.1

    key = jax.random.PRNGKey(0)
    k = jax.random.split(key, 6)

    h = jax.random.normal(k[0], (B, N, INP), dtype=jnp.float32)

    # Deterministic "torch Linear"-style weights (weight shape = (out, in)).
    def init(key, out_f, in_f):
        bound = 1.0 / (in_f ** 0.5)
        return jax.random.uniform(key, (out_f, in_f), jnp.float32, -bound, bound)

    # v1 params
    W_v1 = init(k[1], OUTP, INP)          # W: Linear(inp, outp)
    A_i_v1 = init(k[2], 1, OUTP)          # A_i: Linear(outp, 1)
    A_j_v1 = init(k[3], 1, OUTP)          # A_j: Linear(outp, 1)

    # v2 params
    W_v2lin = init(k[4], OUTP, INP)       # v2: Linear(inp, outp)
    W_v2 = init(k[5], OUTP, 2 * OUTP)     # W: Linear(2*outp, outp)
    A_i_v2 = init(k[2], 1, OUTP)          # A_i: Linear(outp, 1)

    # Tolerances sized for bf16 storage of Wh/U/V and bf16 MXU operands
    # (expected abs error ~1e-3..4e-3 vs. the f32 HIGHEST-precision reference).
    RTOL, ATOL = 2e-2, 1e-2

    # ---- GAT v1 ----
    out_v1 = jax.block_until_ready(graph_attention_v1(h, W_v1, A_i_v1, A_j_v1, alpha=ALPHA))
    ref_v1 = ref_gat_v1(h, W_v1, A_i_v1, A_j_v1, ALPHA)
    assert out_v1.shape == (B, N, OUTP)
    assert jnp.allclose(out_v1, ref_v1, rtol=RTOL, atol=ATOL), "v1 mismatch"

    # ---- GAT v2 ----
    out_v2 = jax.block_until_ready(graph_attention_v2(h, W_v2lin, W_v2, A_i_v2, alpha=ALPHA))
    ref_v2 = ref_gat_v2(h, W_v2lin, W_v2, A_i_v2, ALPHA)
    assert out_v2.shape == (B, N, OUTP)
    assert jnp.allclose(out_v2, ref_v2, rtol=RTOL, atol=ATOL), "v2 mismatch"

    print("KERNEL_OK")
</pallas_src>

<mosaic_0001>
module attributes {stable_mosaic.version = 11 : i64} {
  func.func @_proj_v1_kernel(%arg0: i32, %arg1: memref<32x16xf32, #tpu.memory_space<vmem>>, %arg2: memref<16x128xf32, #tpu.memory_space<vmem>>, %arg3: memref<32x128xbf16, #tpu.memory_space<vmem>>) attributes {dimension_semantics = [#tpu.dimension_semantics<parallel>], iteration_bounds = array<i64: 1>, scalar_prefetch = 0 : i64, scratch_operands = 0 : i64, tpu.core_type = #tpu.core_type<tc>, window_params = [{transform_indices = @transform_0, window_bounds = array<i64: 32, 16>}, {pipeline_mode = #tpu.pipeline_mode<synchronous>, transform_indices = @transform_1, window_bounds = array<i64: 16, 128>}, {transform_indices = @transform_2, window_bounds = array<i64: 32, 128>}]} {
    %c0 = arith.constant 0 : index
    %c0_0 = arith.constant 0 : index
    %0 = vector.load %arg1[%c0, %c0_0] : memref<32x16xf32, #tpu.memory_space<vmem>>, vector<32x16xf32>
    %c0_1 = arith.constant 0 : index
    %c0_2 = arith.constant 0 : index
    %1 = vector.load %arg2[%c0_1, %c0_2] : memref<16x128xf32, #tpu.memory_space<vmem>>, vector<16x128xf32>
    %cst = arith.constant dense<0.000000e+00> : vector<32x128xf32>
    %2 = tpu.matmul %0, %1, %cst {dimension_numbers = #tpu.dot_dimension_numbers<[1], [0], [0], [1], [0, 0, 1, 1], [], []>} : vector<32x16xf32>, vector<16x128xf32>, vector<32x128xf32> -> vector<32x128xf32>
    %3 = arith.truncf %2 : vector<32x128xf32> to vector<32x128xbf16>
    %c0_3 = arith.constant 0 : index
    %c0_4 = arith.constant 0 : index
    %4 = vector.load %arg3[%c0_3, %c0_4] : memref<32x128xbf16, #tpu.memory_space<vmem>>, vector<32x128xbf16>
    tpu.vector_store %arg3[%c0_3, %c0_4], %3 {strides = array<i32>} : memref<32x128xbf16, #tpu.memory_space<vmem>>, vector<32x128xbf16>,
    return
  }
  func.func @transform_0(%arg0: i32) -> (i32, i32) {
    %c0_i32 = arith.constant 0 : i32
    %c0_i32_0 = arith.constant 0 : i32
    return %arg0, %c0_i32 : i32, i32
  }
  func.func @transform_1(%arg0: i32) -> (i32, i32) {
    %c0_i32 = arith.constant 0 : i32
    %c0_i32_0 = arith.constant 0 : i32
    %c0_i32_1 = arith.constant 0 : i32
    return %c0_i32, %c0_i32_0 : i32, i32
  }
  func.func @transform_2(%arg0: i32) -> (i32, i32) {
    %c0_i32 = arith.constant 0 : i32
    %c0_i32_0 = arith.constant 0 : i32
    return %arg0, %c0_i32 : i32, i32
  }
}

</mosaic_0001>

<llo_original>
// kernel: tpu_custom_call.1
$region0: #{tpu_custom_call.1}
  #allocation0 [shape = 'u32[]', space=smem, size = 0x4, offset = 0x4, fixed_abs, tag = 'smem constant byte address 0x4 - core index']
  #allocation1 [shape = 'u32[144,128]{1,0:T(1,128)}', space=vmem, size = 0x12000, scoped, tag = 'internal scratch']
  %s0 = inlined_call_operand.vmem [shape: f32[32,16], index: 0, kind: input, shape index: {}]
  %s1 = inlined_call_operand.vmem [shape: f32[16,128], index: 1, kind: input, shape index: {}]
  %s2 = inlined_call_operand.hbm [shape: bf16[32,128], index: 2, kind: output, shape index: {}]
  %s3 = sld [smem:[#allocation0]]
  $region18: #{tpu_custom_call.1} parent=0
    _
  %s5 = ssub.s32 1, %s3
  %s6 = scalar_select 0, %s5, %s3
  $region1: #{tpu_custom_call.1} parent=0
    #allocation2 [shape = 'u8[8192]{0}', space=vmem, size = 0x2000, scoped, tag = 'output window, operand 0, single buffered']
    #allocation3 [shape = 's32[1]{0}', space=sflag, size = 0x4, scoped, tag = 'scoped memory for tpu_custom_call.1']
    %7 = vsyncpa [#allocation3], 0
    // Predicated region
    $region2: #{tpu_custom_call.1} parent=1 // pred_check
      _
    $region3: #{tpu_custom_call.1} parent=1 // pred_check_branch
      %9 = sbr.rel (0) target = $region5
    $region4: #{tpu_custom_call.1} parent=1 // pred_region
      _
    $region5: #{tpu_custom_call.1} parent=1 // pred_fallthru
      _
    // Predicated region
    $region6: #{tpu_custom_call.1} parent=1 // pred_check
      _
    $region7: #{tpu_custom_call.1} parent=1 // pred_check_branch
      %11 = sbr.rel (0) target = $region9
    $region8: #{tpu_custom_call.1} parent=1 // pred_region
      _
    $region9: #{tpu_custom_call.1} parent=1 // pred_fallthru
      _
    %v12 = vld [vmem:[%s0] sm:$0xff]
    %v13 = vld [vmem:[%s0 + $0x8] sm:$0xff]
    %v14 = vld [vmem:[%s0 + $0x10] sm:$0xff]
    %v15 = vld [vmem:[%s0 + $0x18] sm:$0xff]
    %v16 = vld [vmem:[%s1] sm:$0xff]
    %v17 = vld [vmem:[%s1 + $0x8] sm:$0xff]
    %vm18 = vcmask 130048
    %v20 = vsel %vm18, %v12, 0
    %v23 = vsel %vm18, %v13, 0
    %v26 = vsel %vm18, %v14, 0
    %v29 = vsel %vm18, %v15, 0
    %31 = vmatprep.subr.mxu0 0.0
    %32 = vmatpush1.msra.mxu0 %v16
    %33 = vmatprep.subr.mxu0 0.0
    %34 = vmatpush1.msra.mxu0 %v17
    %35 = vmatprep.subr.mxu0 0.0
    %36 = vmatpush1.msra.mxu0 0.0
    %37 = vmatprep.subr.mxu0 0.0
    %38 = vmatpush1.msra.mxu0 0.0
    %39 = vmatprep.subr.mxu0 0.0
    %40 = vmatpush1.msra.mxu0 0.0
    %41 = vmatprep.subr.mxu0 0.0
    %42 = vmatpush1.msra.mxu0 0.0
    %43 = vmatprep.subr.mxu0 0.0
    %44 = vmatpush1.msra.mxu0 0.0
    %45 = vmatprep.subr.mxu0 0.0
    %46 = vmatpush1.msra.mxu0 0.0
    %47 = vmatprep.subr.mxu0 0.0
    %48 = vmatpush1.msra.mxu0 0.0
    %49 = vmatprep.subr.mxu0 0.0
    %50 = vmatpush1.msra.mxu0 0.0
    %51 = vmatprep.subr.mxu0 0.0
    %52 = vmatpush1.msra.mxu0 0.0
    %53 = vmatprep.subr.mxu0 0.0
    %54 = vmatpush1.msra.mxu0 0.0
    %55 = vmatprep.subr.mxu0 0.0
    %56 = vmatpush1.msra.mxu0 0.0
    %57 = vmatprep.subr.mxu0 0.0
    %58 = vmatpush1.msra.mxu0 0.0
    %59 = vmatprep.subr.mxu0 0.0
    %60 = vmatpush1.msra.mxu0 0.0
    %61 = vmatprep.subr.mxu0 0.0
    %62 = vmatpush1.msra.mxu0 0.0
    %63 = vmatprep.subr.mxu0 0.0
    %64 = vmatpush1.msra.mxu0 0.0
    %65 = vmatprep.subr.mxu0 0.0
    %66 = vmatpush1.msra.mxu0 0.0
    %67 = vmatprep.subr.mxu0 0.0
    %68 = vmatpush1.msra.mxu0 0.0
    %69 = vmatprep.subr.mxu0 0.0
    %70 = vmatpush1.msra.mxu0 0.0
    %71 = vmatprep.subr.mxu0 0.0
    %72 = vmatpush1.msra.mxu0 0.0
    %73 = vmatprep.subr.mxu0 0.0
    %74 = vmatpush1.msra.mxu0 0.0
    %75 = vmatprep.subr.mxu0 0.0
    %76 = vmatpush1.msra.mxu0 0.0
    %77 = vmatprep.subr.mxu0 0.0
    %78 = vmatpush1.msra.mxu0 0.0
    %79 = vmatprep.subr.mxu0 0.0
    %80 = vmatpush1.msra.mxu0 0.0
    %81 = vmatprep.subr.mxu0 0.0
    %82 = vmatpush1.msra.mxu0 0.0
    %83 = vmatprep.subr.mxu0 0.0
    %84 = vmatpush1.msra.mxu0 0.0
    %85 = vmatprep.subr.mxu0 0.0
    %86 = vmatpush1.msra.mxu0 0.0
    %87 = vmatprep.subr.mxu0 0.0
    %88 = vmatpush1.msra.mxu0 0.0
    %89 = vmatprep.subr.mxu0 0.0
    %90 = vmatpush1.msra.mxu0 0.0
    %91 = vmatprep.subr.mxu0 0.0
    %92 = vmatpush1.msra.mxu0 0.0
    %93 = vmatprep.subr.mxu0 0.0
    %94 = vmatpush1.msra.mxu0 0.0
    %95 = vmatprep.mubr.f32.mxu0 0.0
    %96 = vmatmul.mubr.f32.gmra.mrb[0].mxu0 %v20
    %v97 = vpop.f32.mrb[0].mxu0
    %v98 = vadd.f32 0.0, %v97
    %v99 = vpop.f32.mrb[0].mxu0
    %100 = vmatprep.mubr.f32.mxu0 0.0
    %101 = vmatmul.mubr.f32.gmra.mrb[0].mxu0 %v23
    %v102 = vpop.f32.mrb[0].mxu0
    %v103 = vadd.f32 0.0, %v102
    %v104 = vpop.f32.mrb[0].mxu0
    %105 = vmatprep.mubr.f32.mxu0 0.0
    %106 = vmatmul.mubr.f32.gmra.mrb[0].mxu0 %v26
    %v107 = vpop.f32.mrb[0].mxu0
    %v108 = vadd.f32 0.0, %v107
    %v109 = vpop.f32.mrb[0].mxu0
    %110 = vmatprep.mubr.f32.mxu0 0.0
    %111 = vmatmul.mubr.f32.gmra.mrb[0].mxu0 %v29
    %v112 = vpop.f32.mrb[0].mxu0
    %v113 = vadd.f32 0.0, %v112
    %v114 = vpop.f32.mrb[0].mxu0
    %115 = vdwg.mxu0
    %v116 = vpack.c.bf16 %v103, %v98
    %v117 = vpack.c.bf16 %v113, %v108
    %v120 = vunpack.c.l.b16 %v116
    %v121 = vunpack.c.h.b16 %v116
    %v122 = vunpack.c.l.b16 %v117
    %v123 = vunpack.c.h.b16 %v117
    %v124 = vpack.c.b16 %v120, %v120
    %v125 = vpack.c.b16 %v121, %v121
    %v126 = vpack.c.b16 %v122, %v122
    %v127 = vpack.c.b16 %v123, %v123
    %132 = vst [vmem:[#allocation2] sm:$0xf] %v124
    %133 = vst [vmem:[#allocation2 + $0x4] sm:$0xf] %v125
    %134 = vst [vmem:[#allocation2 + $0x8] sm:$0xf] %v126
    %135 = vst [vmem:[#allocation2 + $0xc] sm:$0xf] %v127
    // Predicated region
    $region10: #{tpu_custom_call.1} parent=1 // pred_check
      _
    $region11: #{tpu_custom_call.1} parent=1 // pred_check_branch
      %137 = sbr.rel (0) target = $region13
    $region12: #{tpu_custom_call.1} parent=1 // pred_region
      %s139 = ssub.s32 256, 256
      %140 = vsyncadd [#allocation3], %s139
      %s141 = sshll.u32 [#allocation2], 4
      %s142 = int_to_ptr.vmem [resolvable:$true] %s141
      %147 = dma.vmem_to_hbm [thread:$0]  %s142, 256, %s2, [#allocation3], 64, 64, 4
    $region13: #{tpu_custom_call.1} parent=1 // pred_fallthru
      _
    // Predicated region
    $region14: #{tpu_custom_call.1} parent=1 // pred_check
      _
    $region15: #{tpu_custom_call.1} parent=1 // pred_check_branch
      %149 = sbr.rel (0) target = $region17
    $region16: #{tpu_custom_call.1} parent=1 // pred_region
      %150 = dma.done [#allocation3], 256
    $region17: #{tpu_custom_call.1} parent=1 // pred_fallthru
      _
    %151 = vsyncpa [#allocation3], 1

</llo_original>
